<compile_context>
chip_gen: v5e
topology: v5e:2x2
jax: 0.10.0
libtpu: 0.0.40
codegen_flags: <defaults>
</compile_context>

<pallas_src>
import functools

import jax
import jax.numpy as jnp
from jax import lax
from jax.experimental import pallas as pl
from jax.experimental.pallas import tpu as pltpu


def _round_up(x, m):
    return (x + m - 1) // m * m


def _mlp_kernel(x_ref, w1_ref, b1_ref, w2_ref, b2_ref, o_ref):
    # Hidden layer: (bm, dim) @ (dim, 128) -> f32 accumulate on the MXU.
    h = jnp.dot(x_ref[...], w1_ref[...], preferred_element_type=jnp.float32)
    h = jnp.maximum(h + b1_ref[...], 0.0)                     # f32 epilogue
    # Output layer, transposed for lane-dense stores:
    #   W2 is (2, 128) (PyTorch [out, in] layout), h is (bm, 128)
    #   out_t = W2 @ h^T  -> (2, bm)
    out_t = lax.dot_general(w2_ref[...], h, (((1,), (1,)), ((), ())),
                            preferred_element_type=jnp.float32)
    out_t = out_t + b2_ref[...]                               # b2 is (2, 1)
    o_ref[...] = out_t.astype(o_ref.dtype)


@functools.partial(jax.jit, static_argnames=("block_m", "use_bf16"))
def mlp_detector_forward(x, w1_t, b1, w2, b2, *, block_m=None, use_bf16=False):
    """Fused forward pass of MLPDetector.

    x    : [B, dim]      float32
    w1_t : [dim, 128]    (transposed PyTorch fc[0].weight)
    b1   : [1, 128]
    w2   : [2, 128]      (PyTorch fc[2].weight, NOT transposed)
    b2   : [2, 1]
    returns [B, 2] float32
    """
    B, dim = x.shape
    hidden = w1_t.shape[1]
    out_dim = w2.shape[0]
    out_dtype = x.dtype

    itemsize = 2 if use_bf16 else 4

    # --- choose batch tile -------------------------------------------------
    if block_m is None:
        # Budget ~16 MiB for the double-buffered x tile, cap at 1024 rows.
        x_budget = 16 * 1024 * 1024
        cap = max(128, (x_budget // (2 * dim * itemsize)) // 128 * 128)
        block_m = min(1024, cap)
    if B <= block_m:
        # Single grid step: block covers the whole (padded) batch.
        block_m = _round_up(B, 8)
        b_pad = block_m
    else:
        # Multi-step: block_m must be a multiple of 128 (lane-dense output tile).
        block_m = _round_up(block_m, 128)
        b_pad = _round_up(B, block_m)

    if b_pad != B:
        x = jnp.pad(x, ((0, b_pad - B), (0, 0)))

    in_dtype = jnp.bfloat16 if use_bf16 else x.dtype
    x_in = x.astype(in_dtype)
    w1_in = w1_t.astype(in_dtype)

    # --- VMEM budget (x double-buffer + resident W1 + output double-buffer) --
    vmem_needed = (2 * block_m * dim * itemsize
                   + 2 * dim * hidden * itemsize
                   + 2 * out_dim * block_m * 4
                   + (out_dim + 1) * hidden * 4)
    vmem_limit = max(16 * 1024 * 1024,
                     min(int(vmem_needed * 1.5) + (4 << 20), 56 * 1024 * 1024))

    grid = (b_pad // block_m,)
    out_t = pl.pallas_call(
        _mlp_kernel,
        out_shape=jax.ShapeDtypeStruct((out_dim, b_pad), jnp.float32),
        grid_spec=pltpu.PrefetchScalarGridSpec(
            num_scalar_prefetch=0,
            grid=grid,
            in_specs=[
                pl.BlockSpec((block_m, dim), lambda i: (i, 0)),      # x tile
                pl.BlockSpec((dim, hidden), lambda i: (0, 0)),       # W1^T (resident)
                pl.BlockSpec((1, hidden), lambda i: (0, 0)),         # b1
                pl.BlockSpec((out_dim, hidden), lambda i: (0, 0)),   # W2 (resident)
                pl.BlockSpec((out_dim, 1), lambda i: (0, 0)),        # b2
            ],
            # Transposed, lane-dense output: (2, block_m) tiles of a (2, B_pad) slab.
            out_specs=pl.BlockSpec((out_dim, block_m), lambda i: (0, i)),
        ),
        compiler_params=pltpu.CompilerParams(
            dimension_semantics=("parallel",),   # batch axis shards across TCs (v7x)
            vmem_limit_bytes=vmem_limit,
        ),
    )(x_in, w1_in, b1, w2, b2)

    # Back to PyTorch layout [B, 2]; drop pad rows.
    return out_t.T[:B].astype(out_dtype)


def mlp_detector(x, params, last=False, freeze=False, **kw):
    """Mirrors MLPDetector.forward semantics (last flag returns (out, out))."""
    # freeze only affects autograd in the original module; forward math unchanged.
    out = mlp_detector_forward(x, *params, **kw)
    if last:
        return (out, out)
    return out


def init_params(dim, hidden=128, out_dim=2, seed=0):
    """Deterministic synthetic parameter init (matching nn.Linear shapes)."""
    key = jax.random.PRNGKey(seed)
    k1, k2, k3, k4 = jax.random.split(key, 4)
    # PyTorch Linear: weight [out, in].
    w1 = jax.random.normal(k1, (hidden, dim), jnp.float32) * 0.02
    b1 = jax.random.normal(k2, (hidden,), jnp.float32) * 0.01
    w2 = jax.random.normal(k3, (out_dim, hidden), jnp.float32) * 0.02
    b2 = jax.random.normal(k4, (out_dim,), jnp.float32) * 0.01
    # Kernel layout: W1 pre-transposed [in, hidden]; W2 kept [out, in]; b2 as column.
    return (w1.T, b1.reshape(1, hidden), w2, b2.reshape(out_dim, 1))


def _reference(x, params):
    w1_t, b1, w2, b2 = params
    return jnp.maximum(x @ w1_t + b1, 0.0) @ w2.T + b2.reshape(1, -1)


if __name__ == "__main__":
    # --- small test, single tile, f32 -------------------------------------
    batch, dim = 8, 32  # small shapes consistent with MLPDetector
    key = jax.random.PRNGKey(0)
    x = jax.random.normal(key, (batch, dim), jnp.float32)
    params = init_params(dim)

    out = mlp_detector(x, params, last=False)
    out = jax.block_until_ready(out)
    ref = _reference(x, params)
    assert out.shape == (batch, 2)
    assert jnp.allclose(out, ref, atol=1e-5, rtol=1e-5)

    out_last = mlp_detector(x, params, last=True)
    jax.block_until_ready(out_last)
    assert jnp.allclose(out_last[0], out_last[1])

    # --- ragged batch, multi-tile grid (exercises padding + lane-dense out) --
    batch2, dim2 = 300, 64
    x2 = jax.random.normal(jax.random.PRNGKey(1), (batch2, dim2), jnp.float32)
    params2 = init_params(dim2, seed=1)
    out2 = jax.block_until_ready(
        mlp_detector_forward(x2, *params2, block_m=128))
    ref2 = _reference(x2, params2)
    assert out2.shape == (batch2, 2)
    assert jnp.allclose(out2, ref2, atol=1e-5, rtol=1e-5)

    # --- bf16 input path (v6e/v7x bandwidth lever), looser tolerance ---------
    out3 = jax.block_until_ready(
        mlp_detector_forward(x2, *params2, block_m=128, use_bf16=True))
    assert jnp.allclose(out3, ref2, atol=1e-2, rtol=1e-2)

    print("KERNEL_OK")
</pallas_src>

<mosaic_0001>
module attributes {stable_mosaic.version = 11 : i64} {
  func.func @_mlp_kernel(%arg0: i32, %arg1: memref<8x32xf32, #tpu.memory_space<vmem>>, %arg2: memref<32x128xf32, #tpu.memory_space<vmem>>, %arg3: memref<1x128xf32, #tpu.memory_space<vmem>>, %arg4: memref<2x128xf32, #tpu.memory_space<vmem>>, %arg5: memref<2x1xf32, #tpu.memory_space<vmem>>, %arg6: memref<2x8xf32, #tpu.memory_space<vmem>>) attributes {dimension_semantics = [#tpu.dimension_semantics<parallel>], iteration_bounds = array<i64: 1>, scalar_prefetch = 0 : i64, scratch_operands = 0 : i64, tpu.core_type = #tpu.core_type<tc>, window_params = [{transform_indices = @transform_0, window_bounds = array<i64: 8, 32>}, {pipeline_mode = #tpu.pipeline_mode<synchronous>, transform_indices = @transform_1, window_bounds = array<i64: 32, 128>}, {pipeline_mode = #tpu.pipeline_mode<synchronous>, transform_indices = @transform_2, window_bounds = array<i64: 1, 128>}, {pipeline_mode = #tpu.pipeline_mode<synchronous>, transform_indices = @transform_3, window_bounds = array<i64: 2, 128>}, {pipeline_mode = #tpu.pipeline_mode<synchronous>, transform_indices = @transform_4, window_bounds = array<i64: 2, 1>}, {transform_indices = @transform_5, window_bounds = array<i64: 2, 8>}]} {
    %c0 = arith.constant 0 : index
    %c0_0 = arith.constant 0 : index
    %0 = vector.load %arg1[%c0, %c0_0] : memref<8x32xf32, #tpu.memory_space<vmem>>, vector<8x32xf32>
    %c0_1 = arith.constant 0 : index
    %c0_2 = arith.constant 0 : index
    %1 = vector.load %arg2[%c0_1, %c0_2] : memref<32x128xf32, #tpu.memory_space<vmem>>, vector<32x128xf32>
    %cst = arith.constant dense<0.000000e+00> : vector<8x128xf32>
    %2 = tpu.matmul %0, %1, %cst {dimension_numbers = #tpu.dot_dimension_numbers<[1], [0], [0], [1], [0, 0, 1, 1], [], []>} : vector<8x32xf32>, vector<32x128xf32>, vector<8x128xf32> -> vector<8x128xf32>
    %c0_3 = arith.constant 0 : index
    %c0_4 = arith.constant 0 : index
    %3 = vector.load %arg3[%c0_3, %c0_4] : memref<1x128xf32, #tpu.memory_space<vmem>>, vector<1x128xf32>
    %4 = vector.broadcast %3 : vector<1x128xf32> to vector<8x128xf32>
    %5 = arith.addf %2, %4 : vector<8x128xf32>
    %cst_5 = arith.constant 0.000000e+00 : f32
    %6 = vector.broadcast %cst_5 : f32 to vector<8x128xf32>
    %7 = arith.maximumf %5, %6 : vector<8x128xf32>
    %c0_6 = arith.constant 0 : index
    %c0_7 = arith.constant 0 : index
    %8 = vector.load %arg4[%c0_6, %c0_7] : memref<2x128xf32, #tpu.memory_space<vmem>>, vector<2x128xf32>
    %cst_8 = arith.constant dense<0.000000e+00> : vector<2x8xf32>
    %9 = tpu.matmul %8, %7, %cst_8 {dimension_numbers = #tpu.dot_dimension_numbers<[1], [1], [0], [0], [0, 0, 1, 0], [], []>} : vector<2x128xf32>, vector<8x128xf32>, vector<2x8xf32> -> vector<2x8xf32>
    %c0_9 = arith.constant 0 : index
    %c0_10 = arith.constant 0 : index
    %10 = vector.load %arg5[%c0_9, %c0_10] : memref<2x1xf32, #tpu.memory_space<vmem>>, vector<2x1xf32>
    %11 = vector.broadcast %10 : vector<2x1xf32> to vector<2x8xf32>
    %12 = arith.addf %9, %11 : vector<2x8xf32>
    %c0_11 = arith.constant 0 : index
    %c0_12 = arith.constant 0 : index
    %13 = vector.load %arg6[%c0_11, %c0_12] : memref<2x8xf32, #tpu.memory_space<vmem>>, vector<2x8xf32>
    tpu.vector_store %arg6[%c0_11, %c0_12], %12 {strides = array<i32>} : memref<2x8xf32, #tpu.memory_space<vmem>>, vector<2x8xf32>,
    return
  }
  func.func @transform_0(%arg0: i32) -> (i32, i32) {
    %c0_i32 = arith.constant 0 : i32
    %c0_i32_0 = arith.constant 0 : i32
    return %arg0, %c0_i32 : i32, i32
  }
  func.func @transform_1(%arg0: i32) -> (i32, i32) {
    %c0_i32 = arith.constant 0 : i32
    %c0_i32_0 = arith.constant 0 : i32
    %c0_i32_1 = arith.constant 0 : i32
    return %c0_i32, %c0_i32_0 : i32, i32
  }
  func.func @transform_2(%arg0: i32) -> (i32, i32) {
    %c0_i32 = arith.constant 0 : i32
    %c0_i32_0 = arith.constant 0 : i32
    %c0_i32_1 = arith.constant 0 : i32
    return %c0_i32, %c0_i32_0 : i32, i32
  }
  func.func @transform_3(%arg0: i32) -> (i32, i32) {
    %c0_i32 = arith.constant 0 : i32
    %c0_i32_0 = arith.constant 0 : i32
    %c0_i32_1 = arith.constant 0 : i32
    return %c0_i32, %c0_i32_0 : i32, i32
  }
  func.func @transform_4(%arg0: i32) -> (i32, i32) {
    %c0_i32 = arith.constant 0 : i32
    %c0_i32_0 = arith.constant 0 : i32
    %c0_i32_1 = arith.constant 0 : i32
    return %c0_i32, %c0_i32_0 : i32, i32
  }
  func.func @transform_5(%arg0: i32) -> (i32, i32) {
    %c0_i32 = arith.constant 0 : i32
    %c0_i32_0 = arith.constant 0 : i32
    return %c0_i32, %arg0 : i32, i32
  }
}

</mosaic_0001>

<llo_original>
// kernel: mlp_detector_forward.1
$region0: #{mlp_detector_forward.1}
  #allocation0 [shape = 'u32[]', space=smem, size = 0x4, offset = 0x4, fixed_abs, tag = 'smem constant byte address 0x4 - core index']
  #allocation1 [shape = 'u32[72,128]{1,0:T(1,128)}', space=vmem, size = 0x9000, scoped, tag = 'internal scratch']
  %s0 = inlined_call_operand.hbm [shape: f32[8,32], index: 0, kind: input, shape index: {}]
  %s1 = inlined_call_operand.hbm [shape: f32[32,128], index: 1, kind: input, shape index: {}]
  %s2 = inlined_call_operand.vmem [shape: f32[1,128], index: 2, kind: input, shape index: {}]
  %s3 = inlined_call_operand.vmem [shape: f32[2,128], index: 3, kind: input, shape index: {}]
  %s4 = inlined_call_operand.vmem [shape: f32[2,1], index: 4, kind: input, shape index: {}]
  %s5 = inlined_call_operand.hbm [shape: f32[2,8], index: 5, kind: output, shape index: {}]
  %s6 = sld [smem:[#allocation0]]
  $region38: #{mlp_detector_forward.1} parent=0
    _
  %s8 = ssub.s32 1, %s6
  %s9 = scalar_select 0, %s8, %s6
  $region1: #{mlp_detector_forward.1} parent=0
    #allocation2 [shape = 'u8[4096]{0}', space=vmem, size = 0x1000, scoped, tag = 'input window, operand 0, single buffered']
    #allocation3 [shape = 's32[1]{0}', space=sflag, size = 0x4, scoped, tag = 'scoped memory for mlp_detector_forward.1']
    #allocation4 [shape = 's32[1]{0}', space=sflag, size = 0x4, scoped, tag = 'scoped memory for mlp_detector_forward.1']
    #allocation5 [shape = 'u8[16384]{0}', space=vmem, size = 0x4000, scoped, tag = 'input window, operand 1, single buffered']
    #allocation6 [shape = 's32[1]{0}', space=sflag, size = 0x4, scoped, tag = 'scoped memory for mlp_detector_forward.1']
    #allocation7 [shape = 'u8[1024]{0}', space=vmem, size = 0x400, scoped, tag = 'output window, operand 0, single buffered']
    %10 = vsyncpa [#allocation3], 0
    %11 = vsyncpa [#allocation6], 0
    %12 = vsyncpa [#allocation4], 0
    // Predicated region
    $region2: #{mlp_detector_forward.1} parent=1 // pred_check
      _
    $region3: #{mlp_detector_forward.1} parent=1 // pred_check_branch
      %14 = sbr.rel (0) target = $region5
    $region4: #{mlp_detector_forward.1} parent=1 // pred_region
      %16 = vsyncadd [#allocation3], 0
      %s18 = sshll.u32 %s0, 4
      %s19 = int_to_ptr.hbm [resolvable:$true] %s18
      %s20 = sshll.u32 [#allocation2], 4
      %s21 = int_to_ptr.vmem [resolvable:$true] %s20
      %23 = dma.hbm_to_vmem [thread:$0]  %s19, 128, %s21, [#allocation3]
    $region5: #{mlp_detector_forward.1} parent=1 // pred_fallthru
      _
    // Predicated region
    $region6: #{mlp_detector_forward.1} parent=1 // pred_check
      _
    $region7: #{mlp_detector_forward.1} parent=1 // pred_check_branch
      %25 = sbr.rel (0) target = $region9
    $region8: #{mlp_detector_forward.1} parent=1 // pred_region
      %27 = vsyncadd [#allocation6], 0
      %s28 = sshll.u32 %s1, 4
      %s29 = int_to_ptr.hbm [resolvable:$true] %s28
      %s30 = sshll.u32 [#allocation5], 4
      %s31 = int_to_ptr.vmem [resolvable:$true] %s30
      %36 = dma.hbm_to_vmem [thread:$0]  %s29, 512, %s31, [#allocation6], 128, 128, 8
    $region9: #{mlp_detector_forward.1} parent=1 // pred_fallthru
      _
    // Predicated region
    $region10: #{mlp_detector_forward.1} parent=1 // pred_check
      _
    $region11: #{mlp_detector_forward.1} parent=1 // pred_check_branch
      %38 = sbr.rel (0) target = $region13
    $region12: #{mlp_detector_forward.1} parent=1 // pred_region
      _
    $region13: #{mlp_detector_forward.1} parent=1 // pred_fallthru
      _
    // Predicated region
    $region14: #{mlp_detector_forward.1} parent=1 // pred_check
      _
    $region15: #{mlp_detector_forward.1} parent=1 // pred_check_branch
      %40 = sbr.rel (0) target = $region17
    $region16: #{mlp_detector_forward.1} parent=1 // pred_region
      _
    $region17: #{mlp_detector_forward.1} parent=1 // pred_fallthru
      _
    // Predicated region
    $region18: #{mlp_detector_forward.1} parent=1 // pred_check
      _
    $region19: #{mlp_detector_forward.1} parent=1 // pred_check_branch
      %42 = sbr.rel (0) target = $region21
    $region20: #{mlp_detector_forward.1} parent=1 // pred_region
      _
    $region21: #{mlp_detector_forward.1} parent=1 // pred_fallthru
      _
    // Predicated region
    $region22: #{mlp_detector_forward.1} parent=1 // pred_check
      _
    $region23: #{mlp_detector_forward.1} parent=1 // pred_check_branch
      %44 = sbr.rel (0) target = $region25
    $region24: #{mlp_detector_forward.1} parent=1 // pred_region
      %46 = dma.done [#allocation3], 128
    $region25: #{mlp_detector_forward.1} parent=1 // pred_fallthru
      _
    // Predicated region
    $region26: #{mlp_detector_forward.1} parent=1 // pred_check
      _
    $region27: #{mlp_detector_forward.1} parent=1 // pred_check_branch
      %48 = sbr.rel (0) target = $region29
    $region28: #{mlp_detector_forward.1} parent=1 // pred_region
      %50 = dma.done [#allocation6], 512
    $region29: #{mlp_detector_forward.1} parent=1 // pred_fallthru
      _
    %v51 = vld [vmem:[#allocation2] sm:$0xff]
    %v52 = vld [vmem:[#allocation5] sm:$0xff]
    %v53 = vld [vmem:[#allocation5 + $0x8] sm:$0xff]
    %v54 = vld [vmem:[#allocation5 + $0x10] sm:$0xff]
    %v55 = vld [vmem:[#allocation5 + $0x18] sm:$0xff]
    %v56 = vld [vmem:[%s2] sm:$0x1]
    %v58 = vperm.slane %v56, 0
    %vm60 = vcmask 261120
    %v62 = vsel %vm60, %v51, 0
    %64 = vmatpush.msra.mxu0 0.0
    %65 = vmatpush.msra.mxu0 0.0
    %66 = vmatpush.msra.mxu0 0.0
    %67 = vmatpush.msra.mxu0 0.0
    %68 = vmatpush.msra.mxu0 0.0
    %69 = vmatpush.msra.mxu0 0.0
    %70 = vmatpush.msra.mxu0 0.0
    %71 = vmatpush.msra.mxu0 0.0
    %72 = vmatpush.msra.mxu0 0.0
    %73 = vmatpush.msra.mxu0 0.0
    %74 = vmatpush.msra.mxu0 0.0
    %75 = vmatpush.msra.mxu0 0.0
    %76 = vmatpush.msra.mxu0 %v55
    %77 = vmatpush.msra.mxu0 %v54
    %78 = vmatpush.msra.mxu0 %v53
    %79 = vmatpush.msra.mxu0 %v52
    %80 = vmatmul.f32.gmra.mxu0 %v62
    %v81 = vpop.f32.mrf.mxu0
    %v82 = vadd.f32 %v58, %v81
    %83 = vdwg.mxu0
    %v84 = vmax.f32 %v82, 0.0
    %v85 = vld [vmem:[%s3] sm:$0x3]
    %v86 = vld [vmem:[%s4] sm:$0x3]
    %88 = vset.pattern.permute.xlu0 0
    %89 = vperm.xlu0 %88, %v86
    %v90 = vpop.permute.xlu0 %89
    %92 = vmatpush.xpose.msra.mxu0 0.0
    %93 = vmatpush.xpose.msra.mxu0 0.0
    %94 = vmatpush.xpose.msra.mxu0 0.0
    %95 = vmatpush.xpose.msra.mxu0 0.0
    %96 = vmatpush.xpose.msra.mxu0 0.0
    %97 = vmatpush.xpose.msra.mxu0 0.0
    %98 = vmatpush.xpose.msra.mxu0 0.0
    %99 = vmatpush.xpose.msra.mxu0 0.0
    %100 = vmatpush.xpose.msra.mxu0 0.0
    %101 = vmatpush.xpose.msra.mxu0 0.0
    %102 = vmatpush.xpose.msra.mxu0 0.0
    %103 = vmatpush.xpose.msra.mxu0 0.0
    %104 = vmatpush.xpose.msra.mxu0 0.0
    %105 = vmatpush.xpose.msra.mxu0 0.0
    %106 = vmatpush.xpose.msra.mxu0 0.0
    %107 = vmatpush.xpose.msra.mxu0 %v84
    %108 = vmatmul.f32.gmra.mxu0 %v85
    %v109 = vpop.f32.mrf.mxu0
    %v110 = vadd.f32 %v90, %v109
    %111 = vdwg.mxu0
    %vm112 = vcmask 58368
    %113 = vst.msk [vmem:[#allocation7] sm:$0x3] %vm112, %v110
    // Predicated region
    $region30: #{mlp_detector_forward.1} parent=1 // pred_check
      _
    $region31: #{mlp_detector_forward.1} parent=1 // pred_check_branch
      %115 = sbr.rel (0) target = $region33
    $region32: #{mlp_detector_forward.1} parent=1 // pred_region
      %117 = vsyncadd [#allocation4], 0
      %s119 = sshll.u32 [#allocation7], 4
      %s120 = int_to_ptr.vmem [resolvable:$true] %s119
      %s121 = sshll.u32 %s5, 4
      %s122 = int_to_ptr.hbm [resolvable:$true] %s121
      %124 = dma.vmem_to_hbm [thread:$0]  %s120, 32, %s122, [#allocation4]
    $region33: #{mlp_detector_forward.1} parent=1 // pred_fallthru
      _
    // Predicated region
    $region34: #{mlp_detector_forward.1} parent=1 // pred_check
      _
    $region35: #{mlp_detector_forward.1} parent=1 // pred_check_branch
      %126 = sbr.rel (0) target = $region37
    $region36: #{mlp_detector_forward.1} parent=1 // pred_region
      %128 = dma.done [#allocation4], 32
    $region37: #{mlp_detector_forward.1} parent=1 // pred_fallthru
      _
    %129 = vsyncpa [#allocation3], 1
    %130 = vsyncpa [#allocation6], 1
    %131 = vsyncpa [#allocation4], 1

</llo_original>
